<compile_context>
chip_gen: v5e
topology: v5e:2x2
jax: 0.10.0
libtpu: 0.0.40
codegen_flags: <defaults>
</compile_context>

<pallas_src>
import functools

import jax
import jax.numpy as jnp
import numpy as np
from jax.experimental import pallas as pl
from jax.experimental.pallas import tpu as pltpu


def _residual_unit_kernel(x_ref, w1_ref, b1_ref, w2_ref, b2_ref,
                          hrow_ref, wcol_ref, o_ref, *, H, W):
    # x_ref    : (Cp, N)     activations, N = B*H*W pixels on the lane axis
    # w*_ref   : (Cp, 9*Cp)  fused tap weights, col index = (kh*3+kw)*Cp + c_in
    # b*_ref   : (Cp, 1)     biases
    # hrow_ref : (1, N)      per-lane image row index  h = (p % (H*W)) // W
    # wcol_ref : (1, N)      per-lane image col index  w =  p % W
    # o_ref    : (Cp, N)     output
    Cp, N = x_ref.shape
    hh = jnp.broadcast_to(hrow_ref[...], (Cp, N))
    ww = jnp.broadcast_to(wcol_ref[...], (Cp, N))

    def conv3x3(r, w_ref, b_ref):
        # Build the 9 (dy, dx)-shifted taps with XLU rolls + boundary masks,
        # then one fused (Cp, 9*Cp) x (9*Cp, N) MXU matmul.
        taps = []
        for dy in (-1, 0, 1):
            for dx in (-1, 0, 1):
                off = dy * W + dx
                if off == 0:
                    taps.append(r)
                    continue
                # out[p] = r[p + off]  (wrap handled by the boundary mask)
                shifted = pltpu.roll(r, shift=(-off) % N, axis=1)
                conds = []
                if dy < 0:
                    conds.append(hh >= -dy)          # h + dy >= 0
                if dy > 0:
                    conds.append(hh < H - dy)        # h + dy <  H
                if dx < 0:
                    conds.append(ww >= -dx)          # w + dx >= 0
                if dx > 0:
                    conds.append(ww < W - dx)        # w + dx <  W
                valid = conds[0]
                for c in conds[1:]:
                    valid = valid & c
                taps.append(jnp.where(valid, shifted, 0.0))
        patch = jnp.concatenate(taps, axis=0)        # (9*Cp, N)
        y = jnp.dot(w_ref[...], patch, preferred_element_type=jnp.float32)
        return y + b_ref[...]                        # lane-broadcast bias

    x = x_ref[...]
    y1 = conv3x3(jnp.maximum(x, 0.0), w1_ref, b1_ref)   # bn_relu_conv 1
    y2 = conv3x3(jnp.maximum(y1, 0.0), w2_ref, b2_ref)  # bn_relu_conv 2
    o_ref[...] = (y2 + x).astype(o_ref.dtype)           # residual add (pre-relu x)


def residual_unit(x_nchw, w1, b1, w2, b2):
    """x_nchw: (B, C, H, W) f32; w*: (C, C, 3, 3) torch OIHW; b*: (C,)."""
    B, C, H, W = x_nchw.shape
    Cp = max(8, ((C + 7) // 8) * 8)      # channels -> sublanes (multiple of 8)
    N = B * H * W                        # pixels   -> lanes (lane-dense)

    # NCHW, pad channels, fold (B, H, W) onto the lane axis: (Cp, B*H*W).
    x = jnp.pad(x_nchw.astype(jnp.float32),
                ((0, 0), (0, Cp - C), (0, 0), (0, 0)))
    x2 = jnp.transpose(x, (1, 0, 2, 3)).reshape(Cp, N)

    def pack_w(w):
        # torch (c_out, c_in, kh, kw) -> fused (Cp, 9*Cp), col=(kh*3+kw)*Cp+ci
        wt = jnp.transpose(w.astype(jnp.float32), (0, 2, 3, 1))
        wt = jnp.pad(wt, ((0, Cp - C), (0, 0), (0, 0), (0, Cp - C)))
        return wt.reshape(Cp, 9 * Cp)

    def pack_b(b):
        return jnp.pad(b.astype(jnp.float32), (0, Cp - C)).reshape(Cp, 1)

    # Per-lane (h, w) image coordinates (repeat per batch element), built on
    # the host so the kernel needs no vector integer div/mod.
    pix = np.tile(np.arange(H * W, dtype=np.int32), B)
    hrow = jnp.asarray((pix // W)[None, :])
    wcol = jnp.asarray((pix % W)[None, :])

    kernel = functools.partial(_residual_unit_kernel, H=H, W=W)
    out2 = pl.pallas_call(
        kernel,
        out_shape=jax.ShapeDtypeStruct((Cp, N), jnp.float32),
        grid=(1,),
        in_specs=[
            pl.BlockSpec((Cp, N), lambda i: (0, 0)),
            pl.BlockSpec((Cp, 9 * Cp), lambda i: (0, 0)),
            pl.BlockSpec((Cp, 1), lambda i: (0, 0)),
            pl.BlockSpec((Cp, 9 * Cp), lambda i: (0, 0)),
            pl.BlockSpec((Cp, 1), lambda i: (0, 0)),
            pl.BlockSpec((1, N), lambda i: (0, 0)),
            pl.BlockSpec((1, N), lambda i: (0, 0)),
        ],
        out_specs=pl.BlockSpec((Cp, N), lambda i: (0, 0)),
        compiler_params=pltpu.CompilerParams(
            dimension_semantics=("arbitrary",)),
    )(x2, pack_w(w1), pack_b(b1), pack_w(w2), pack_b(b2), hrow, wcol)

    # (Cp, B*H*W) -> (B, C, H, W), strip channel padding.
    out = jnp.transpose(out2.reshape(Cp, B, H, W), (1, 0, 2, 3))
    return out[:, :C]


def residual_unit_ref(x, w1, b1, w2, b2):
    """Pure-JAX reference matching the PyTorch module (NCHW)."""
    def conv(x, w, b):
        y = jax.lax.conv_general_dilated(
            x, w, window_strides=(1, 1), padding=((1, 1), (1, 1)),
            dimension_numbers=("NCHW", "OIHW", "NCHW"))
        return y + b[None, :, None, None]

    out = conv(jnp.maximum(x, 0.0), w1, b1)
    out = conv(jnp.maximum(out, 0.0), w2, b2)
    return out + x


if __name__ == "__main__":
    B, C, H, W = 2, 4, 16, 16
    key = jax.random.PRNGKey(0)
    kx, kw1, kb1, kw2, kb2 = jax.random.split(key, 5)

    x = jax.random.normal(kx, (B, C, H, W), dtype=jnp.float32)
    w1 = jax.random.normal(kw1, (C, C, 3, 3), dtype=jnp.float32) * 0.1
    b1 = jax.random.normal(kb1, (C,), dtype=jnp.float32) * 0.1
    w2 = jax.random.normal(kw2, (C, C, 3, 3), dtype=jnp.float32) * 0.1
    b2 = jax.random.normal(kb2, (C,), dtype=jnp.float32) * 0.1

    out = jax.block_until_ready(residual_unit(x, w1, b1, w2, b2))
    ref = jax.block_until_ready(residual_unit_ref(x, w1, b1, w2, b2))
    np.testing.assert_allclose(np.asarray(out), np.asarray(ref),
                               rtol=1e-4, atol=1e-4)
    print("KERNEL_OK")
</pallas_src>

<mosaic_0001>
module attributes {stable_mosaic.version = 11 : i64} {
  func.func @_residual_unit_kernel(%arg0: i32, %arg1: memref<8x512xf32, #tpu.memory_space<vmem>>, %arg2: memref<8x72xf32, #tpu.memory_space<vmem>>, %arg3: memref<8x1xf32, #tpu.memory_space<vmem>>, %arg4: memref<8x72xf32, #tpu.memory_space<vmem>>, %arg5: memref<8x1xf32, #tpu.memory_space<vmem>>, %arg6: memref<1x512xi32, #tpu.memory_space<vmem>>, %arg7: memref<1x512xi32, #tpu.memory_space<vmem>>, %arg8: memref<8x512xf32, #tpu.memory_space<vmem>>) attributes {dimension_semantics = [#tpu.dimension_semantics<arbitrary>], iteration_bounds = array<i64: 1>, scalar_prefetch = 0 : i64, scratch_operands = 0 : i64, tpu.core_type = #tpu.core_type<tc>, window_params = [{pipeline_mode = #tpu.pipeline_mode<synchronous>, transform_indices = @transform_0, window_bounds = array<i64: 8, 512>}, {pipeline_mode = #tpu.pipeline_mode<synchronous>, transform_indices = @transform_1, window_bounds = array<i64: 8, 72>}, {pipeline_mode = #tpu.pipeline_mode<synchronous>, transform_indices = @transform_2, window_bounds = array<i64: 8, 1>}, {pipeline_mode = #tpu.pipeline_mode<synchronous>, transform_indices = @transform_3, window_bounds = array<i64: 8, 72>}, {pipeline_mode = #tpu.pipeline_mode<synchronous>, transform_indices = @transform_4, window_bounds = array<i64: 8, 1>}, {pipeline_mode = #tpu.pipeline_mode<synchronous>, transform_indices = @transform_5, window_bounds = array<i64: 1, 512>}, {pipeline_mode = #tpu.pipeline_mode<synchronous>, transform_indices = @transform_6, window_bounds = array<i64: 1, 512>}, {pipeline_mode = #tpu.pipeline_mode<synchronous>, transform_indices = @transform_7, window_bounds = array<i64: 8, 512>}]} {
    %c0 = arith.constant 0 : index
    %c0_0 = arith.constant 0 : index
    %0 = vector.load %arg6[%c0, %c0_0] : memref<1x512xi32, #tpu.memory_space<vmem>>, vector<1x512xi32>
    %1 = vector.shape_cast %0 : vector<1x512xi32> to vector<1x512xi32>
    %2 = vector.broadcast %1 : vector<1x512xi32> to vector<8x512xi32>
    %c0_1 = arith.constant 0 : index
    %c0_2 = arith.constant 0 : index
    %3 = vector.load %arg7[%c0_1, %c0_2] : memref<1x512xi32, #tpu.memory_space<vmem>>, vector<1x512xi32>
    %4 = vector.shape_cast %3 : vector<1x512xi32> to vector<1x512xi32>
    %5 = vector.broadcast %4 : vector<1x512xi32> to vector<8x512xi32>
    %c0_3 = arith.constant 0 : index
    %c0_4 = arith.constant 0 : index
    %6 = vector.load %arg1[%c0_3, %c0_4] : memref<8x512xf32, #tpu.memory_space<vmem>>, vector<8x512xf32>
    %cst = arith.constant 0.000000e+00 : f32
    %7 = vector.broadcast %cst : f32 to vector<8x512xf32>
    %8 = arith.maximumf %6, %7 : vector<8x512xf32>
    %c17_i32 = arith.constant 17 : i32
    %9 = tpu.dynamic_rotate %8 by %c17_i32 dim 1 : vector<8x512xf32>, i32 -> vector<8x512xf32>
    %c1_i32 = arith.constant 1 : i32
    %10 = vector.broadcast %c1_i32 : i32 to vector<8x512xi32>
    %11 = arith.cmpi sge, %2, %10 : vector<8x512xi32>
    %c1_i32_5 = arith.constant 1 : i32
    %12 = vector.broadcast %c1_i32_5 : i32 to vector<8x512xi32>
    %13 = arith.cmpi sge, %5, %12 : vector<8x512xi32>
    %14 = arith.andi %11, %13 : vector<8x512xi1>
    %cst_6 = arith.constant 0.000000e+00 : f32
    %15 = vector.broadcast %cst_6 : f32 to vector<8x512xf32>
    %16 = arith.select %14, %9, %15 : vector<8x512xi1>, vector<8x512xf32>
    %c16_i32 = arith.constant 16 : i32
    %17 = tpu.dynamic_rotate %8 by %c16_i32 dim 1 : vector<8x512xf32>, i32 -> vector<8x512xf32>
    %c1_i32_7 = arith.constant 1 : i32
    %18 = vector.broadcast %c1_i32_7 : i32 to vector<8x512xi32>
    %19 = arith.cmpi sge, %2, %18 : vector<8x512xi32>
    %cst_8 = arith.constant 0.000000e+00 : f32
    %20 = vector.broadcast %cst_8 : f32 to vector<8x512xf32>
    %21 = arith.select %19, %17, %20 : vector<8x512xi1>, vector<8x512xf32>
    %c15_i32 = arith.constant 15 : i32
    %22 = tpu.dynamic_rotate %8 by %c15_i32 dim 1 : vector<8x512xf32>, i32 -> vector<8x512xf32>
    %c1_i32_9 = arith.constant 1 : i32
    %23 = vector.broadcast %c1_i32_9 : i32 to vector<8x512xi32>
    %24 = arith.cmpi sge, %2, %23 : vector<8x512xi32>
    %c15_i32_10 = arith.constant 15 : i32
    %25 = vector.broadcast %c15_i32_10 : i32 to vector<8x512xi32>
    %26 = arith.cmpi slt, %5, %25 : vector<8x512xi32>
    %27 = arith.andi %24, %26 : vector<8x512xi1>
    %cst_11 = arith.constant 0.000000e+00 : f32
    %28 = vector.broadcast %cst_11 : f32 to vector<8x512xf32>
    %29 = arith.select %27, %22, %28 : vector<8x512xi1>, vector<8x512xf32>
    %c1_i32_12 = arith.constant 1 : i32
    %30 = tpu.dynamic_rotate %8 by %c1_i32_12 dim 1 : vector<8x512xf32>, i32 -> vector<8x512xf32>
    %c1_i32_13 = arith.constant 1 : i32
    %31 = vector.broadcast %c1_i32_13 : i32 to vector<8x512xi32>
    %32 = arith.cmpi sge, %5, %31 : vector<8x512xi32>
    %cst_14 = arith.constant 0.000000e+00 : f32
    %33 = vector.broadcast %cst_14 : f32 to vector<8x512xf32>
    %34 = arith.select %32, %30, %33 : vector<8x512xi1>, vector<8x512xf32>
    %c511_i32 = arith.constant 511 : i32
    %35 = tpu.dynamic_rotate %8 by %c511_i32 dim 1 : vector<8x512xf32>, i32 -> vector<8x512xf32>
    %c15_i32_15 = arith.constant 15 : i32
    %36 = vector.broadcast %c15_i32_15 : i32 to vector<8x512xi32>
    %37 = arith.cmpi slt, %5, %36 : vector<8x512xi32>
    %cst_16 = arith.constant 0.000000e+00 : f32
    %38 = vector.broadcast %cst_16 : f32 to vector<8x512xf32>
    %39 = arith.select %37, %35, %38 : vector<8x512xi1>, vector<8x512xf32>
    %c497_i32 = arith.constant 497 : i32
    %40 = tpu.dynamic_rotate %8 by %c497_i32 dim 1 : vector<8x512xf32>, i32 -> vector<8x512xf32>
    %c15_i32_17 = arith.constant 15 : i32
    %41 = vector.broadcast %c15_i32_17 : i32 to vector<8x512xi32>
    %42 = arith.cmpi slt, %2, %41 : vector<8x512xi32>
    %c1_i32_18 = arith.constant 1 : i32
    %43 = vector.broadcast %c1_i32_18 : i32 to vector<8x512xi32>
    %44 = arith.cmpi sge, %5, %43 : vector<8x512xi32>
    %45 = arith.andi %42, %44 : vector<8x512xi1>
    %cst_19 = arith.constant 0.000000e+00 : f32
    %46 = vector.broadcast %cst_19 : f32 to vector<8x512xf32>
    %47 = arith.select %45, %40, %46 : vector<8x512xi1>, vector<8x512xf32>
    %c496_i32 = arith.constant 496 : i32
    %48 = tpu.dynamic_rotate %8 by %c496_i32 dim 1 : vector<8x512xf32>, i32 -> vector<8x512xf32>
    %c15_i32_20 = arith.constant 15 : i32
    %49 = vector.broadcast %c15_i32_20 : i32 to vector<8x512xi32>
    %50 = arith.cmpi slt, %2, %49 : vector<8x512xi32>
    %cst_21 = arith.constant 0.000000e+00 : f32
    %51 = vector.broadcast %cst_21 : f32 to vector<8x512xf32>
    %52 = arith.select %50, %48, %51 : vector<8x512xi1>, vector<8x512xf32>
    %c495_i32 = arith.constant 495 : i32
    %53 = tpu.dynamic_rotate %8 by %c495_i32 dim 1 : vector<8x512xf32>, i32 -> vector<8x512xf32>
    %c15_i32_22 = arith.constant 15 : i32
    %54 = vector.broadcast %c15_i32_22 : i32 to vector<8x512xi32>
    %55 = arith.cmpi slt, %2, %54 : vector<8x512xi32>
    %c15_i32_23 = arith.constant 15 : i32
    %56 = vector.broadcast %c15_i32_23 : i32 to vector<8x512xi32>
    %57 = arith.cmpi slt, %5, %56 : vector<8x512xi32>
    %58 = arith.andi %55, %57 : vector<8x512xi1>
    %cst_24 = arith.constant 0.000000e+00 : f32
    %59 = vector.broadcast %cst_24 : f32 to vector<8x512xf32>
    %60 = arith.select %58, %53, %59 : vector<8x512xi1>, vector<8x512xf32>
    %61 = tpu.concatenate %16, %21, %29, %34, %8, %39, %47, %52, %60 in 0 : vector<8x512xf32>, vector<8x512xf32>, vector<8x512xf32>, vector<8x512xf32>, vector<8x512xf32>, vector<8x512xf32>, vector<8x512xf32>, vector<8x512xf32>, vector<8x512xf32> -> vector<72x512xf32>
    %c0_25 = arith.constant 0 : index
    %c0_26 = arith.constant 0 : index
    %62 = vector.load %arg2[%c0_25, %c0_26] : memref<8x72xf32, #tpu.memory_space<vmem>>, vector<8x72xf32>
    %cst_27 = arith.constant dense<0.000000e+00> : vector<8x512xf32>
    %63 = tpu.matmul %62, %61, %cst_27 {dimension_numbers = #tpu.dot_dimension_numbers<[1], [0], [0], [1], [0, 0, 1, 1], [], []>} : vector<8x72xf32>, vector<72x512xf32>, vector<8x512xf32> -> vector<8x512xf32>
    %c0_28 = arith.constant 0 : index
    %c0_29 = arith.constant 0 : index
    %64 = vector.load %arg3[%c0_28, %c0_29] : memref<8x1xf32, #tpu.memory_space<vmem>>, vector<8x1xf32>
    %65 = vector.broadcast %64 : vector<8x1xf32> to vector<8x512xf32>
    %66 = arith.addf %63, %65 : vector<8x512xf32>
    %cst_30 = arith.constant 0.000000e+00 : f32
    %67 = vector.broadcast %cst_30 : f32 to vector<8x512xf32>
    %68 = arith.maximumf %66, %67 : vector<8x512xf32>
    %c17_i32_31 = arith.constant 17 : i32
    %69 = tpu.dynamic_rotate %68 by %c17_i32_31 dim 1 : vector<8x512xf32>, i32 -> vector<8x512xf32>
    %c1_i32_32 = arith.constant 1 : i32
    %70 = vector.broadcast %c1_i32_32 : i32 to vector<8x512xi32>
    %71 = arith.cmpi sge, %2, %70 : vector<8x512xi32>
    %c1_i32_33 = arith.constant 1 : i32
    %72 = vector.broadcast %c1_i32_33 : i32 to vector<8x512xi32>
    %73 = arith.cmpi sge, %5, %72 : vector<8x512xi32>
    %74 = arith.andi %71, %73 : vector<8x512xi1>
    %cst_34 = arith.constant 0.000000e+00 : f32
    %75 = vector.broadcast %cst_34 : f32 to vector<8x512xf32>
    %76 = arith.select %74, %69, %75 : vector<8x512xi1>, vector<8x512xf32>
    %c16_i32_35 = arith.constant 16 : i32
    %77 = tpu.dynamic_rotate %68 by %c16_i32_35 dim 1 : vector<8x512xf32>, i32 -> vector<8x512xf32>
    %c1_i32_36 = arith.constant 1 : i32
    %78 = vector.broadcast %c1_i32_36 : i32 to vector<8x512xi32>
    %79 = arith.cmpi sge, %2, %78 : vector<8x512xi32>
    %cst_37 = arith.constant 0.000000e+00 : f32
    %80 = vector.broadcast %cst_37 : f32 to vector<8x512xf32>
    %81 = arith.select %79, %77, %80 : vector<8x512xi1>, vector<8x512xf32>
    %c15_i32_38 = arith.constant 15 : i32
    %82 = tpu.dynamic_rotate %68 by %c15_i32_38 dim 1 : vector<8x512xf32>, i32 -> vector<8x512xf32>
    %c1_i32_39 = arith.constant 1 : i32
    %83 = vector.broadcast %c1_i32_39 : i32 to vector<8x512xi32>
    %84 = arith.cmpi sge, %2, %83 : vector<8x512xi32>
    %c15_i32_40 = arith.constant 15 : i32
    %85 = vector.broadcast %c15_i32_40 : i32 to vector<8x512xi32>
    %86 = arith.cmpi slt, %5, %85 : vector<8x512xi32>
    %87 = arith.andi %84, %86 : vector<8x512xi1>
    %cst_41 = arith.constant 0.000000e+00 : f32
    %88 = vector.broadcast %cst_41 : f32 to vector<8x512xf32>
    %89 = arith.select %87, %82, %88 : vector<8x512xi1>, vector<8x512xf32>
    %c1_i32_42 = arith.constant 1 : i32
    %90 = tpu.dynamic_rotate %68 by %c1_i32_42 dim 1 : vector<8x512xf32>, i32 -> vector<8x512xf32>
    %c1_i32_43 = arith.constant 1 : i32
    %91 = vector.broadcast %c1_i32_43 : i32 to vector<8x512xi32>
    %92 = arith.cmpi sge, %5, %91 : vector<8x512xi32>
    %cst_44 = arith.constant 0.000000e+00 : f32
    %93 = vector.broadcast %cst_44 : f32 to vector<8x512xf32>
    %94 = arith.select %92, %90, %93 : vector<8x512xi1>, vector<8x512xf32>
    %c511_i32_45 = arith.constant 511 : i32
    %95 = tpu.dynamic_rotate %68 by %c511_i32_45 dim 1 : vector<8x512xf32>, i32 -> vector<8x512xf32>
    %c15_i32_46 = arith.constant 15 : i32
    %96 = vector.broadcast %c15_i32_46 : i32 to vector<8x512xi32>
    %97 = arith.cmpi slt, %5, %96 : vector<8x512xi32>
    %cst_47 = arith.constant 0.000000e+00 : f32
    %98 = vector.broadcast %cst_47 : f32 to vector<8x512xf32>
    %99 = arith.select %97, %95, %98 : vector<8x512xi1>, vector<8x512xf32>
    %c497_i32_48 = arith.constant 497 : i32
    %100 = tpu.dynamic_rotate %68 by %c497_i32_48 dim 1 : vector<8x512xf32>, i32 -> vector<8x512xf32>
    %c15_i32_49 = arith.constant 15 : i32
    %101 = vector.broadcast %c15_i32_49 : i32 to vector<8x512xi32>
    %102 = arith.cmpi slt, %2, %101 : vector<8x512xi32>
    %c1_i32_50 = arith.constant 1 : i32
    %103 = vector.broadcast %c1_i32_50 : i32 to vector<8x512xi32>
    %104 = arith.cmpi sge, %5, %103 : vector<8x512xi32>
    %105 = arith.andi %102, %104 : vector<8x512xi1>
    %cst_51 = arith.constant 0.000000e+00 : f32
    %106 = vector.broadcast %cst_51 : f32 to vector<8x512xf32>
    %107 = arith.select %105, %100, %106 : vector<8x512xi1>, vector<8x512xf32>
    %c496_i32_52 = arith.constant 496 : i32
    %108 = tpu.dynamic_rotate %68 by %c496_i32_52 dim 1 : vector<8x512xf32>, i32 -> vector<8x512xf32>
    %c15_i32_53 = arith.constant 15 : i32
    %109 = vector.broadcast %c15_i32_53 : i32 to vector<8x512xi32>
    %110 = arith.cmpi slt, %2, %109 : vector<8x512xi32>
    %cst_54 = arith.constant 0.000000e+00 : f32
    %111 = vector.broadcast %cst_54 : f32 to vector<8x512xf32>
    %112 = arith.select %110, %108, %111 : vector<8x512xi1>, vector<8x512xf32>
    %c495_i32_55 = arith.constant 495 : i32
    %113 = tpu.dynamic_rotate %68 by %c495_i32_55 dim 1 : vector<8x512xf32>, i32 -> vector<8x512xf32>
    %c15_i32_56 = arith.constant 15 : i32
    %114 = vector.broadcast %c15_i32_56 : i32 to vector<8x512xi32>
    %115 = arith.cmpi slt, %2, %114 : vector<8x512xi32>
    %c15_i32_57 = arith.constant 15 : i32
    %116 = vector.broadcast %c15_i32_57 : i32 to vector<8x512xi32>
    %117 = arith.cmpi slt, %5, %116 : vector<8x512xi32>
    %118 = arith.andi %115, %117 : vector<8x512xi1>
    %cst_58 = arith.constant 0.000000e+00 : f32
    %119 = vector.broadcast %cst_58 : f32 to vector<8x512xf32>
    %120 = arith.select %118, %113, %119 : vector<8x512xi1>, vector<8x512xf32>
    %121 = tpu.concatenate %76, %81, %89, %94, %68, %99, %107, %112, %120 in 0 : vector<8x512xf32>, vector<8x512xf32>, vector<8x512xf32>, vector<8x512xf32>, vector<8x512xf32>, vector<8x512xf32>, vector<8x512xf32>, vector<8x512xf32>, vector<8x512xf32> -> vector<72x512xf32>
    %c0_59 = arith.constant 0 : index
    %c0_60 = arith.constant 0 : index
    %122 = vector.load %arg4[%c0_59, %c0_60] : memref<8x72xf32, #tpu.memory_space<vmem>>, vector<8x72xf32>
    %cst_61 = arith.constant dense<0.000000e+00> : vector<8x512xf32>
    %123 = tpu.matmul %122, %121, %cst_61 {dimension_numbers = #tpu.dot_dimension_numbers<[1], [0], [0], [1], [0, 0, 1, 1], [], []>} : vector<8x72xf32>, vector<72x512xf32>, vector<8x512xf32> -> vector<8x512xf32>
    %c0_62 = arith.constant 0 : index
    %c0_63 = arith.constant 0 : index
    %124 = vector.load %arg5[%c0_62, %c0_63] : memref<8x1xf32, #tpu.memory_space<vmem>>, vector<8x1xf32>
    %125 = vector.broadcast %124 : vector<8x1xf32> to vector<8x512xf32>
    %126 = arith.addf %123, %125 : vector<8x512xf32>
    %127 = arith.addf %126, %6 : vector<8x512xf32>
    %c0_64 = arith.constant 0 : index
    %c0_65 = arith.constant 0 : index
    %128 = vector.load %arg8[%c0_64, %c0_65] : memref<8x512xf32, #tpu.memory_space<vmem>>, vector<8x512xf32>
    tpu.vector_store %arg8[%c0_64, %c0_65], %127 {strides = array<i32>} : memref<8x512xf32, #tpu.memory_space<vmem>>, vector<8x512xf32>,
    return
  }
  func.func @transform_0(%arg0: i32) -> (i32, i32) {
    %c0_i32 = arith.constant 0 : i32
    %c0_i32_0 = arith.constant 0 : i32
    %c0_i32_1 = arith.constant 0 : i32
    return %c0_i32, %c0_i32_0 : i32, i32
  }
  func.func @transform_1(%arg0: i32) -> (i32, i32) {
    %c0_i32 = arith.constant 0 : i32
    %c0_i32_0 = arith.constant 0 : i32
    %c0_i32_1 = arith.constant 0 : i32
    return %c0_i32, %c0_i32_0 : i32, i32
  }
  func.func @transform_2(%arg0: i32) -> (i32, i32) {
    %c0_i32 = arith.constant 0 : i32
    %c0_i32_0 = arith.constant 0 : i32
    %c0_i32_1 = arith.constant 0 : i32
    return %c0_i32, %c0_i32_0 : i32, i32
  }
  func.func @transform_3(%arg0: i32) -> (i32, i32) {
    %c0_i32 = arith.constant 0 : i32
    %c0_i32_0 = arith.constant 0 : i32
    %c0_i32_1 = arith.constant 0 : i32
    return %c0_i32, %c0_i32_0 : i32, i32
  }
  func.func @transform_4(%arg0: i32) -> (i32, i32) {
    %c0_i32 = arith.constant 0 : i32
    %c0_i32_0 = arith.constant 0 : i32
    %c0_i32_1 = arith.constant 0 : i32
    return %c0_i32, %c0_i32_0 : i32, i32
  }
  func.func @transform_5(%arg0: i32) -> (i32, i32) {
    %c0_i32 = arith.constant 0 : i32
    %c0_i32_0 = arith.constant 0 : i32
    %c0_i32_1 = arith.constant 0 : i32
    return %c0_i32, %c0_i32_0 : i32, i32
  }
  func.func @transform_6(%arg0: i32) -> (i32, i32) {
    %c0_i32 = arith.constant 0 : i32
    %c0_i32_0 = arith.constant 0 : i32
    %c0_i32_1 = arith.constant 0 : i32
    return %c0_i32, %c0_i32_0 : i32, i32
  }
  func.func @transform_7(%arg0: i32) -> (i32, i32) {
    %c0_i32 = arith.constant 0 : i32
    %c0_i32_0 = arith.constant 0 : i32
    %c0_i32_1 = arith.constant 0 : i32
    return %c0_i32, %c0_i32_0 : i32, i32
  }
}

</mosaic_0001>

<llo_original>
// kernel: tpu_custom_call.1
$region0: #{tpu_custom_call.1}
  #allocation0 [shape = 'u32[]', space=smem, size = 0x4, offset = 0x4, fixed_abs, tag = 'smem constant byte address 0x4 - core index']
  #allocation1 [shape = 'u32[72,128]{1,0:T(1,128)}', space=vmem, size = 0x9000, scoped, tag = 'internal scratch']
  %s0 = inlined_call_operand.hbm [shape: f32[8,512], index: 0, kind: input, shape index: {}]
  %s1 = inlined_call_operand.vmem [shape: f32[8,72], index: 1, kind: input, shape index: {}]
  %s2 = inlined_call_operand.vmem [shape: f32[8,1], index: 2, kind: input, shape index: {}]
  %s3 = inlined_call_operand.vmem [shape: f32[8,72], index: 3, kind: input, shape index: {}]
  %s4 = inlined_call_operand.vmem [shape: f32[8,1], index: 4, kind: input, shape index: {}]
  %s5 = inlined_call_operand.hbm [shape: s32[1,512], index: 5, kind: input, shape index: {}]
  %s6 = inlined_call_operand.vmem [shape: s32[1,512], index: 6, kind: input, shape index: {}]
  %s7 = inlined_call_operand.hbm [shape: f32[8,512], index: 7, kind: output, shape index: {}]
  %s8 = sld [smem:[#allocation0]]
  $region46: #{tpu_custom_call.1} parent=0
    _
  %s10 = ssub.s32 1, %s8
  %s11 = scalar_select 0, %s10, %s8
  $region1: #{tpu_custom_call.1} parent=0
    #allocation2 [shape = 'u8[16384]{0}', space=vmem, size = 0x4000, scoped, tag = 'input window, operand 0, single buffered']
    #allocation3 [shape = 's32[1]{0}', space=sflag, size = 0x4, scoped, tag = 'scoped memory for tpu_custom_call.1']
    #allocation4 [shape = 's32[1]{0}', space=sflag, size = 0x4, scoped, tag = 'scoped memory for tpu_custom_call.1']
    #allocation5 [shape = 'u8[2048]{0}', space=vmem, size = 0x800, scoped, tag = 'input window, operand 5, single buffered']
    #allocation6 [shape = 's32[1]{0}', space=sflag, size = 0x4, scoped, tag = 'scoped memory for tpu_custom_call.1']
    #allocation7 [shape = 'u8[16384]{0}', space=vmem, size = 0x4000, scoped, tag = 'output window, operand 0, single buffered']
    %12 = vsyncpa [#allocation3], 0
    %13 = vsyncpa [#allocation6], 0
    %14 = vsyncpa [#allocation4], 0
    // Predicated region
    $region2: #{tpu_custom_call.1} parent=1 // pred_check
      _
    $region3: #{tpu_custom_call.1} parent=1 // pred_check_branch
      %16 = sbr.rel (0) target = $region5
    $region4: #{tpu_custom_call.1} parent=1 // pred_region
      %18 = vsyncadd [#allocation3], 0
      %s20 = sshll.u32 %s0, 4
      %s21 = int_to_ptr.hbm [resolvable:$true] %s20
      %s22 = sshll.u32 [#allocation2], 4
      %s23 = int_to_ptr.vmem [resolvable:$true] %s22
      %25 = dma.hbm_to_vmem [thread:$0]  %s21, 512, %s23, [#allocation3]
    $region5: #{tpu_custom_call.1} parent=1 // pred_fallthru
      _
    // Predicated region
    $region6: #{tpu_custom_call.1} parent=1 // pred_check
      _
    $region7: #{tpu_custom_call.1} parent=1 // pred_check_branch
      %27 = sbr.rel (0) target = $region9
    $region8: #{tpu_custom_call.1} parent=1 // pred_region
      _
    $region9: #{tpu_custom_call.1} parent=1 // pred_fallthru
      _
    // Predicated region
    $region10: #{tpu_custom_call.1} parent=1 // pred_check
      _
    $region11: #{tpu_custom_call.1} parent=1 // pred_check_branch
      %29 = sbr.rel (0) target = $region13
    $region12: #{tpu_custom_call.1} parent=1 // pred_region
      _
    $region13: #{tpu_custom_call.1} parent=1 // pred_fallthru
      _
    // Predicated region
    $region14: #{tpu_custom_call.1} parent=1 // pred_check
      _
    $region15: #{tpu_custom_call.1} parent=1 // pred_check_branch
      %31 = sbr.rel (0) target = $region17
    $region16: #{tpu_custom_call.1} parent=1 // pred_region
      _
    $region17: #{tpu_custom_call.1} parent=1 // pred_fallthru
      _
    // Predicated region
    $region18: #{tpu_custom_call.1} parent=1 // pred_check
      _
    $region19: #{tpu_custom_call.1} parent=1 // pred_check_branch
      %33 = sbr.rel (0) target = $region21
    $region20: #{tpu_custom_call.1} parent=1 // pred_region
      _
    $region21: #{tpu_custom_call.1} parent=1 // pred_fallthru
      _
    // Predicated region
    $region22: #{tpu_custom_call.1} parent=1 // pred_check
      _
    $region23: #{tpu_custom_call.1} parent=1 // pred_check_branch
      %35 = sbr.rel (0) target = $region25
    $region24: #{tpu_custom_call.1} parent=1 // pred_region
      %37 = vsyncadd [#allocation6], 0
      %s39 = sshll.u32 %s5, 4
      %s40 = int_to_ptr.hbm [resolvable:$true] %s39
      %s41 = sshll.u32 [#allocation5], 4
      %s42 = int_to_ptr.vmem [resolvable:$true] %s41
      %44 = dma.hbm_to_vmem [thread:$0]  %s40, 64, %s42, [#allocation6]
    $region25: #{tpu_custom_call.1} parent=1 // pred_fallthru
      _
    // Predicated region
    $region26: #{tpu_custom_call.1} parent=1 // pred_check
      _
    $region27: #{tpu_custom_call.1} parent=1 // pred_check_branch
      %46 = sbr.rel (0) target = $region29
    $region28: #{tpu_custom_call.1} parent=1 // pred_region
      _
    $region29: #{tpu_custom_call.1} parent=1 // pred_fallthru
      _
    // Predicated region
    $region30: #{tpu_custom_call.1} parent=1 // pred_check
      _
    $region31: #{tpu_custom_call.1} parent=1 // pred_check_branch
      %48 = sbr.rel (0) target = $region33
    $region32: #{tpu_custom_call.1} parent=1 // pred_region
      %50 = dma.done [#allocation3], 512
    $region33: #{tpu_custom_call.1} parent=1 // pred_fallthru
      _
    // Predicated region
    $region34: #{tpu_custom_call.1} parent=1 // pred_check
      _
    $region35: #{tpu_custom_call.1} parent=1 // pred_check_branch
      %52 = sbr.rel (0) target = $region37
    $region36: #{tpu_custom_call.1} parent=1 // pred_region
      %54 = dma.done [#allocation6], 64
    $region37: #{tpu_custom_call.1} parent=1 // pred_fallthru
      _
    %v55 = vld [vmem:[#allocation5] sm:$0xf]
    %v56 = vperm.slane %v55, 0
    %v57 = vperm.slane %v55, 1
    %v58 = vperm.slane %v55, 2
    %v59 = vperm.slane %v55, 3
    %v60 = vld [vmem:[%s6] sm:$0xf]
    %v61 = vperm.slane %v60, 0
    %v62 = vperm.slane %v60, 1
    %v63 = vperm.slane %v60, 2
    %v64 = vperm.slane %v60, 3
    %v65 = vld [vmem:[#allocation2] sm:$0xff]
    %v66 = vld [vmem:[#allocation2 + $0x8] sm:$0xff]
    %v67 = vld [vmem:[#allocation2 + $0x10] sm:$0xff]
    %v68 = vld [vmem:[#allocation2 + $0x18] sm:$0xff]
    %v69 = vmax.f32 %v65, 0.0
    %v70 = vmax.f32 %v66, 0.0
    %v71 = vmax.f32 %v67, 0.0
    %v72 = vmax.f32 %v68, 0.0
    %73 = vrot.lane.b32.xlu0 %v69, 17
    %v74 = vpop.permute.xlu0 %73
    %75 = vrot.lane.b32.xlu0 %v70, 17
    %v76 = vpop.permute.xlu0 %75
    %77 = vrot.lane.b32.xlu0 %v71, 17
    %v78 = vpop.permute.xlu0 %77
    %79 = vrot.lane.b32.xlu0 %v72, 17
    %v80 = vpop.permute.xlu0 %79
    %v81 = vlaneseq
    %v82 = vand.u32 %v81, 127
    %vm83 = vcmp.lt.s32.totalorder %v82, 17
    %v84 = vsel %vm83, %v78, %v80
    %v85 = vsel %vm83, %v76, %v78
    %v86 = vsel %vm83, %v74, %v76
    %v87 = vsel %vm83, %v80, %v74
    %vm88 = vcmp.ge.s32.totalorder %v56, 1
    %vm89 = vcmp.ge.s32.totalorder %v57, 1
    %vm90 = vcmp.ge.s32.totalorder %v58, 1
    %vm91 = vcmp.ge.s32.totalorder %v59, 1
    %vm92 = vcmp.ge.s32.totalorder %v61, 1
    %vm93 = vcmp.ge.s32.totalorder %v62, 1
    %vm94 = vcmp.ge.s32.totalorder %v63, 1
    %vm95 = vcmp.ge.s32.totalorder %v64, 1
    %vm96 = vmand %vm88, %vm92
    %vm97 = vmand %vm89, %vm93
    %vm98 = vmand %vm90, %vm94
    %vm99 = vmand %vm91, %vm95
    %v100 = vsel %vm96, %v87, 0.0
    %v101 = vsel %vm97, %v86, 0.0
    %v102 = vsel %vm98, %v85, 0.0
    %v103 = vsel %vm99, %v84, 0.0
    %104 = vrot.lane.b32.xlu0 %v69, 16
    %v105 = vpop.permute.xlu0 %104
    %106 = vrot.lane.b32.xlu0 %v70, 16
    %v107 = vpop.permute.xlu0 %106
    %108 = vrot.lane.b32.xlu0 %v71, 16
    %v109 = vpop.permute.xlu0 %108
    %110 = vrot.lane.b32.xlu0 %v72, 16
    %v111 = vpop.permute.xlu0 %110
    %vm112 = vcmp.lt.s32.totalorder %v82, 16
    %v113 = vsel %vm112, %v109, %v111
    %v114 = vsel %vm112, %v107, %v109
    %v115 = vsel %vm112, %v105, %v107
    %v116 = vsel %vm112, %v111, %v105
    %v117 = vsel %vm88, %v116, 0.0
    %v118 = vsel %vm89, %v115, 0.0
    %v119 = vsel %vm90, %v114, 0.0
    %v120 = vsel %vm91, %v113, 0.0
    %121 = vrot.lane.b32.xlu0 %v69, 15
    %v122 = vpop.permute.xlu0 %121
    %123 = vrot.lane.b32.xlu0 %v70, 15
    %v124 = vpop.permute.xlu0 %123
    %125 = vrot.lane.b32.xlu0 %v71, 15
    %v126 = vpop.permute.xlu0 %125
    %127 = vrot.lane.b32.xlu0 %v72, 15
    %v128 = vpop.permute.xlu0 %127
    %vm129 = vcmp.lt.s32.totalorder %v82, 15
    %v130 = vsel %vm129, %v126, %v128
    %v131 = vsel %vm129, %v124, %v126
    %v132 = vsel %vm129, %v122, %v124
    %v133 = vsel %vm129, %v128, %v122
    %vm134 = vcmp.lt.s32.totalorder %v61, 15
    %vm135 = vcmp.lt.s32.totalorder %v62, 15
    %vm136 = vcmp.lt.s32.totalorder %v63, 15
    %vm137 = vcmp.lt.s32.totalorder %v64, 15
    %vm138 = vmand %vm88, %vm134
    %vm139 = vmand %vm89, %vm135
    %vm140 = vmand %vm90, %vm136
    %vm141 = vmand %vm91, %vm137
    %v142 = vsel %vm138, %v133, 0.0
    %v143 = vsel %vm139, %v132, 0.0
    %v144 = vsel %vm140, %v131, 0.0
    %v145 = vsel %vm141, %v130, 0.0
    %146 = vrot.lane.b32.xlu0 %v69, 1
    %v147 = vpop.permute.xlu0 %146
    %148 = vrot.lane.b32.xlu0 %v70, 1
    %v149 = vpop.permute.xlu0 %148
    %150 = vrot.lane.b32.xlu0 %v71, 1
    %v151 = vpop.permute.xlu0 %150
    %152 = vrot.lane.b32.xlu0 %v72, 1
    %v153 = vpop.permute.xlu0 %152
    %vm154 = vcmp.lt.s32.totalorder %v82, 1
    %v155 = vsel %vm154, %v151, %v153
    %v156 = vsel %vm154, %v149, %v151
    %v157 = vsel %vm154, %v147, %v149
    %v158 = vsel %vm154, %v153, %v147
    %v159 = vsel %vm92, %v158, 0.0
    %v160 = vsel %vm93, %v157, 0.0
    %v161 = vsel %vm94, %v156, 0.0
    %v162 = vsel %vm95, %v155, 0.0
    %163 = vrot.lane.b32.xlu0 %v69, 127
    %v164 = vpop.permute.xlu0 %163
    %165 = vrot.lane.b32.xlu0 %v70, 127
    %v166 = vpop.permute.xlu0 %165
    %167 = vrot.lane.b32.xlu0 %v71, 127
    %v168 = vpop.permute.xlu0 %167
    %169 = vrot.lane.b32.xlu0 %v72, 127
    %v170 = vpop.permute.xlu0 %169
    %vm171 = vcmp.lt.s32.totalorder %v82, 127
    %v172 = vsel %vm171, %v168, %v170
    %v173 = vsel %vm171, %v166, %v168
    %v174 = vsel %vm171, %v164, %v166
    %v175 = vsel %vm171, %v170, %v164
    %v176 = vsel %vm134, %v174, 0.0
    %v177 = vsel %vm135, %v173, 0.0
    %v178 = vsel %vm136, %v172, 0.0
    %v179 = vsel %vm137, %v175, 0.0
    %180 = vrot.lane.b32.xlu0 %v69, 113
    %v181 = vpop.permute.xlu0 %180
    %182 = vrot.lane.b32.xlu0 %v70, 113
    %v183 = vpop.permute.xlu0 %182
    %184 = vrot.lane.b32.xlu0 %v71, 113
    %v185 = vpop.permute.xlu0 %184
    %186 = vrot.lane.b32.xlu0 %v72, 113
    %v187 = vpop.permute.xlu0 %186
    %vm188 = vcmp.lt.s32.totalorder %v82, 113
    %v189 = vsel %vm188, %v185, %v187
    %v190 = vsel %vm188, %v183, %v185
    %v191 = vsel %vm188, %v181, %v183
    %v192 = vsel %vm188, %v187, %v181
    %vm193 = vcmp.lt.s32.totalorder %v56, 15
    %vm194 = vcmp.lt.s32.totalorder %v57, 15
    %vm195 = vcmp.lt.s32.totalorder %v58, 15
    %vm196 = vcmp.lt.s32.totalorder %v59, 15
    %vm197 = vmand %vm193, %vm92
    %vm198 = vmand %vm194, %vm93
    %vm199 = vmand %vm195, %vm94
    %vm200 = vmand %vm196, %vm95
    %v201 = vsel %vm197, %v191, 0.0
    %v202 = vsel %vm198, %v190, 0.0
    %v203 = vsel %vm199, %v189, 0.0
    %v204 = vsel %vm200, %v192, 0.0
    %205 = vrot.lane.b32.xlu0 %v69, 112
    %v206 = vpop.permute.xlu0 %205
    %207 = vrot.lane.b32.xlu0 %v70, 112
    %v208 = vpop.permute.xlu0 %207
    %209 = vrot.lane.b32.xlu0 %v71, 112
    %v210 = vpop.permute.xlu0 %209
    %211 = vrot.lane.b32.xlu0 %v72, 112
    %v212 = vpop.permute.xlu0 %211
    %vm213 = vcmp.lt.s32.totalorder %v82, 112
    %v214 = vsel %vm213, %v210, %v212
    %v215 = vsel %vm213, %v208, %v210
    %v216 = vsel %vm213, %v206, %v208
    %v217 = vsel %vm213, %v212, %v206
    %v218 = vsel %vm193, %v216, 0.0
    %v219 = vsel %vm194, %v215, 0.0
    %v220 = vsel %vm195, %v214, 0.0
    %v221 = vsel %vm196, %v217, 0.0
    %222 = vrot.lane.b32.xlu0 %v69, 111
    %v223 = vpop.permute.xlu0 %222
    %224 = vrot.lane.b32.xlu0 %v70, 111
    %v225 = vpop.permute.xlu0 %224
    %226 = vrot.lane.b32.xlu0 %v71, 111
    %v227 = vpop.permute.xlu0 %226
    %228 = vrot.lane.b32.xlu0 %v72, 111
    %v229 = vpop.permute.xlu0 %228
    %vm230 = vcmp.lt.s32.totalorder %v82, 111
    %v231 = vsel %vm230, %v227, %v229
    %v232 = vsel %vm230, %v225, %v227
    %v233 = vsel %vm230, %v223, %v225
    %v234 = vsel %vm230, %v229, %v223
    %vm235 = vmand %vm193, %vm134
    %vm236 = vmand %vm194, %vm135
    %vm237 = vmand %vm195, %vm136
    %vm238 = vmand %vm196, %vm137
    %v239 = vsel %vm235, %v233, 0.0
    %v240 = vsel %vm236, %v232, 0.0
    %v241 = vsel %vm237, %v231, 0.0
    %v242 = vsel %vm238, %v234, 0.0
    %v243 = vld [vmem:[%s1] sm:$0xff]
    %v244 = vld [vmem:[%s2] sm:$0xff]
    %246 = vset.pattern.permute.xlu0 0
    %247 = vperm.xlu0 %246, %v244
    %v248 = vpop.permute.xlu0 %247
    %vm250 = vcmask 588800
    %v252 = vsel %vm250, %v243, 0
    %254 = vmatpush.msra.mxu0 0.0
    %255 = vmatpush.msra.mxu0 0.0
    %256 = vmatpush.msra.mxu0 0.0
    %257 = vmatpush.msra.mxu0 0.0
    %258 = vmatpush.msra.mxu0 0.0
    %259 = vmatpush.msra.mxu0 0.0
    %260 = vmatpush.msra.mxu0 0.0
    %261 = vmatpush.msra.mxu0 %v239
    %262 = vmatpush.msra.mxu0 %v218
    %263 = vmatpush.msra.mxu0 %v201
    %264 = vmatpush.msra.mxu0 %v176
    %265 = vmatpush.msra.mxu0 %v69
    %266 = vmatpush.msra.mxu0 %v159
    %267 = vmatpush.msra.mxu0 %v142
    %268 = vmatpush.msra.mxu0 %v117
    %269 = vmatpush.msra.mxu0 %v100
    %270 = vmatmul.f32.gmra.mxu0 %v252
    %v271 = vpop.f32.mrf.mxu0
    %v272 = vadd.f32 %v248, %v271
    %273 = vdwg.mxu0
    %274 = vmatpush.msra.mxu0 0.0
    %275 = vmatpush.msra.mxu0 0.0
    %276 = vmatpush.msra.mxu0 0.0
    %277 = vmatpush.msra.mxu0 0.0
    %278 = vmatpush.msra.mxu0 0.0
    %279 = vmatpush.msra.mxu0 0.0
    %280 = vmatpush.msra.mxu0 0.0
    %281 = vmatpush.msra.mxu0 %v240
    %282 = vmatpush.msra.mxu0 %v219
    %283 = vmatpush.msra.mxu0 %v202
    %284 = vmatpush.msra.mxu0 %v177
    %285 = vmatpush.msra.mxu0 %v70
    %286 = vmatpush.msra.mxu0 %v160
    %287 = vmatpush.msra.mxu0 %v143
    %288 = vmatpush.msra.mxu0 %v118
    %289 = vmatpush.msra.mxu0 %v101
    %290 = vmatmul.f32.gmra.mxu0 %v252
    %v291 = vpop.f32.mrf.mxu0
    %v292 = vadd.f32 %v248, %v291
    %293 = vdwg.mxu0
    %294 = vmatpush.msra.mxu0 0.0
    %295 = vmatpush.msra.mxu0 0.0
    %296 = vmatpush.msra.mxu0 0.0
    %297 = vmatpush.msra.mxu0 0.0
    %298 = vmatpush.msra.mxu0 0.0
    %299 = vmatpush.msra.mxu0 0.0
    %300 = vmatpush.msra.mxu0 0.0
    %301 = vmatpush.msra.mxu0 %v241
    %302 = vmatpush.msra.mxu0 %v220
    %303 = vmatpush.msra.mxu0 %v203
    %304 = vmatpush.msra.mxu0 %v178
    %305 = vmatpush.msra.mxu0 %v71
    %306 = vmatpush.msra.mxu0 %v161
    %307 = vmatpush.msra.mxu0 %v144
    %308 = vmatpush.msra.mxu0 %v119
    %309 = vmatpush.msra.mxu0 %v102
    %310 = vmatmul.f32.gmra.mxu0 %v252
    %v311 = vpop.f32.mrf.mxu0
    %v312 = vadd.f32 %v248, %v311
    %313 = vdwg.mxu0
    %314 = vmatpush.msra.mxu0 0.0
    %315 = vmatpush.msra.mxu0 0.0
    %316 = vmatpush.msra.mxu0 0.0
    %317 = vmatpush.msra.mxu0 0.0
    %318 = vmatpush.msra.mxu0 0.0
    %319 = vmatpush.msra.mxu0 0.0
    %320 = vmatpush.msra.mxu0 0.0
    %321 = vmatpush.msra.mxu0 %v242
    %322 = vmatpush.msra.mxu0 %v221
    %323 = vmatpush.msra.mxu0 %v204
    %324 = vmatpush.msra.mxu0 %v179
    %325 = vmatpush.msra.mxu0 %v72
    %326 = vmatpush.msra.mxu0 %v162
    %327 = vmatpush.msra.mxu0 %v145
    %328 = vmatpush.msra.mxu0 %v120
    %329 = vmatpush.msra.mxu0 %v103
    %330 = vmatmul.f32.gmra.mxu0 %v252
    %v331 = vpop.f32.mrf.mxu0
    %v332 = vadd.f32 %v248, %v331
    %333 = vdwg.mxu0
    %v334 = vmax.f32 %v272, 0.0
    %v335 = vmax.f32 %v292, 0.0
    %v336 = vmax.f32 %v312, 0.0
    %v337 = vmax.f32 %v332, 0.0
    %338 = vrot.lane.b32.xlu0 %v334, 17
    %v339 = vpop.permute.xlu0 %338
    %340 = vrot.lane.b32.xlu0 %v335, 17
    %v341 = vpop.permute.xlu0 %340
    %342 = vrot.lane.b32.xlu0 %v336, 17
    %v343 = vpop.permute.xlu0 %342
    %344 = vrot.lane.b32.xlu0 %v337, 17
    %v345 = vpop.permute.xlu0 %344
    %v346 = vsel %vm83, %v343, %v345
    %v347 = vsel %vm83, %v341, %v343
    %v348 = vsel %vm83, %v339, %v341
    %v349 = vsel %vm83, %v345, %v339
    %v350 = vsel %vm96, %v349, 0.0
    %v351 = vsel %vm97, %v348, 0.0
    %v352 = vsel %vm98, %v347, 0.0
    %v353 = vsel %vm99, %v346, 0.0
    %354 = vrot.lane.b32.xlu0 %v334, 16
    %v355 = vpop.permute.xlu0 %354
    %356 = vrot.lane.b32.xlu0 %v335, 16
    %v357 = vpop.permute.xlu0 %356
    %358 = vrot.lane.b32.xlu0 %v336, 16
    %v359 = vpop.permute.xlu0 %358
    %360 = vrot.lane.b32.xlu0 %v337, 16
    %v361 = vpop.permute.xlu0 %360
    %v362 = vsel %vm112, %v359, %v361
    %v363 = vsel %vm112, %v357, %v359
    %v364 = vsel %vm112, %v355, %v357
    %v365 = vsel %vm112, %v361, %v355
    %v366 = vsel %vm88, %v365, 0.0
    %v367 = vsel %vm89, %v364, 0.0
    %v368 = vsel %vm90, %v363, 0.0
    %v369 = vsel %vm91, %v362, 0.0
    %370 = vrot.lane.b32.xlu0 %v334, 15
    %v371 = vpop.permute.xlu0 %370
    %372 = vrot.lane.b32.xlu0 %v335, 15
    %v373 = vpop.permute.xlu0 %372
    %374 = vrot.lane.b32.xlu0 %v336, 15
    %v375 = vpop.permute.xlu0 %374
    %376 = vrot.lane.b32.xlu0 %v337, 15
    %v377 = vpop.permute.xlu0 %376
    %v378 = vsel %vm129, %v375, %v377
    %v379 = vsel %vm129, %v373, %v375
    %v380 = vsel %vm129, %v371, %v373
    %v381 = vsel %vm129, %v377, %v371
    %v382 = vsel %vm138, %v381, 0.0
    %v383 = vsel %vm139, %v380, 0.0
    %v384 = vsel %vm140, %v379, 0.0
    %v385 = vsel %vm141, %v378, 0.0
    %386 = vrot.lane.b32.xlu0 %v334, 1
    %v387 = vpop.permute.xlu0 %386
    %388 = vrot.lane.b32.xlu0 %v335, 1
    %v389 = vpop.permute.xlu0 %388
    %390 = vrot.lane.b32.xlu0 %v336, 1
    %v391 = vpop.permute.xlu0 %390
    %392 = vrot.lane.b32.xlu0 %v337, 1
    %v393 = vpop.permute.xlu0 %392
    %v394 = vsel %vm154, %v391, %v393
    %v395 = vsel %vm154, %v389, %v391
    %v396 = vsel %vm154, %v387, %v389
    %v397 = vsel %vm154, %v393, %v387
    %v398 = vsel %vm92, %v397, 0.0
    %v399 = vsel %vm93, %v396, 0.0
    %v400 = vsel %vm94, %v395, 0.0
    %v401 = vsel %vm95, %v394, 0.0
    %402 = vrot.lane.b32.xlu0 %v334, 127
    %v403 = vpop.permute.xlu0 %402
    %404 = vrot.lane.b32.xlu0 %v335, 127
    %v405 = vpop.permute.xlu0 %404
    %406 = vrot.lane.b32.xlu0 %v336, 127
    %v407 = vpop.permute.xlu0 %406
    %408 = vrot.lane.b32.xlu0 %v337, 127
    %v409 = vpop.permute.xlu0 %408
    %v410 = vsel %vm171, %v407, %v409
    %v411 = vsel %vm171, %v405, %v407
    %v412 = vsel %vm171, %v403, %v405
    %v413 = vsel %vm171, %v409, %v403
    %v414 = vsel %vm134, %v412, 0.0
    %v415 = vsel %vm135, %v411, 0.0
    %v416 = vsel %vm136, %v410, 0.0
    %v417 = vsel %vm137, %v413, 0.0
    %418 = vrot.lane.b32.xlu0 %v334, 113
    %v419 = vpop.permute.xlu0 %418
    %420 = vrot.lane.b32.xlu0 %v335, 113
    %v421 = vpop.permute.xlu0 %420
    %422 = vrot.lane.b32.xlu0 %v336, 113
    %v423 = vpop.permute.xlu0 %422
    %424 = vrot.lane.b32.xlu0 %v337, 113
    %v425 = vpop.permute.xlu0 %424
    %v426 = vsel %vm188, %v423, %v425
    %v427 = vsel %vm188, %v421, %v423
    %v428 = vsel %vm188, %v419, %v421
    %v429 = vsel %vm188, %v425, %v419
    %v430 = vsel %vm197, %v428, 0.0
    %v431 = vsel %vm198, %v427, 0.0
    %v432 = vsel %vm199, %v426, 0.0
    %v433 = vsel %vm200, %v429, 0.0
    %434 = vrot.lane.b32.xlu0 %v334, 112
    %v435 = vpop.permute.xlu0 %434
    %436 = vrot.lane.b32.xlu0 %v335, 112
    %v437 = vpop.permute.xlu0 %436
    %438 = vrot.lane.b32.xlu0 %v336, 112
    %v439 = vpop.permute.xlu0 %438
    %440 = vrot.lane.b32.xlu0 %v337, 112
    %v441 = vpop.permute.xlu0 %440
    %v442 = vsel %vm213, %v439, %v441
    %v443 = vsel %vm213, %v437, %v439
    %v444 = vsel %vm213, %v435, %v437
    %v445 = vsel %vm213, %v441, %v435
    %v446 = vsel %vm193, %v444, 0.0
    %v447 = vsel %vm194, %v443, 0.0
    %v448 = vsel %vm195, %v442, 0.0
    %v449 = vsel %vm196, %v445, 0.0
    %450 = vrot.lane.b32.xlu0 %v334, 111
    %v451 = vpop.permute.xlu0 %450
    %452 = vrot.lane.b32.xlu0 %v335, 111
    %v453 = vpop.permute.xlu0 %452
    %454 = vrot.lane.b32.xlu0 %v336, 111
    %v455 = vpop.permute.xlu0 %454
    %456 = vrot.lane.b32.xlu0 %v337, 111
    %v457 = vpop.permute.xlu0 %456
    %v458 = vsel %vm230, %v455, %v457
    %v459 = vsel %vm230, %v453, %v455
    %v460 = vsel %vm230, %v451, %v453
    %v461 = vsel %vm230, %v457, %v451
    %v462 = vsel %vm235, %v460, 0.0
    %v463 = vsel %vm236, %v459, 0.0
    %v464 = vsel %vm237, %v458, 0.0
    %v465 = vsel %vm238, %v461, 0.0
    %v466 = vld [vmem:[%s3] sm:$0xff]
    %v467 = vld [vmem:[%s4] sm:$0xff]
    %469 = vset.pattern.permute.xlu0 0
    %470 = vperm.xlu0 %469, %v467
    %v471 = vpop.permute.xlu0 %470
    %v474 = vsel %vm250, %v466, 0
    %476 = vmatpush.msra.mxu0 0.0
    %477 = vmatpush.msra.mxu0 0.0
    %478 = vmatpush.msra.mxu0 0.0
    %479 = vmatpush.msra.mxu0 0.0
    %480 = vmatpush.msra.mxu0 0.0
    %481 = vmatpush.msra.mxu0 0.0
    %482 = vmatpush.msra.mxu0 0.0
    %483 = vmatpush.msra.mxu0 %v462
    %484 = vmatpush.msra.mxu0 %v446
    %485 = vmatpush.msra.mxu0 %v430
    %486 = vmatpush.msra.mxu0 %v414
    %487 = vmatpush.msra.mxu0 %v334
    %488 = vmatpush.msra.mxu0 %v398
    %489 = vmatpush.msra.mxu0 %v382
    %490 = vmatpush.msra.mxu0 %v366
    %491 = vmatpush.msra.mxu0 %v350
    %492 = vmatmul.f32.gmra.mxu0 %v474
    %v493 = vpop.f32.mrf.mxu0
    %v494 = vadd.f32 %v471, %v493
    %495 = vdwg.mxu0
    %496 = vmatpush.msra.mxu0 0.0
    %497 = vmatpush.msra.mxu0 0.0
    %498 = vmatpush.msra.mxu0 0.0
    %499 = vmatpush.msra.mxu0 0.0
    %500 = vmatpush.msra.mxu0 0.0
    %501 = vmatpush.msra.mxu0 0.0
    %502 = vmatpush.msra.mxu0 0.0
    %503 = vmatpush.msra.mxu0 %v463
    %504 = vmatpush.msra.mxu0 %v447
    %505 = vmatpush.msra.mxu0 %v431
    %506 = vmatpush.msra.mxu0 %v415
    %507 = vmatpush.msra.mxu0 %v335
    %508 = vmatpush.msra.mxu0 %v399
    %509 = vmatpush.msra.mxu0 %v383
    %510 = vmatpush.msra.mxu0 %v367
    %511 = vmatpush.msra.mxu0 %v351
    %512 = vmatmul.f32.gmra.mxu0 %v474
    %v513 = vpop.f32.mrf.mxu0
    %v514 = vadd.f32 %v471, %v513
    %515 = vdwg.mxu0
    %516 = vmatpush.msra.mxu0 0.0
    %517 = vmatpush.msra.mxu0 0.0
    %518 = vmatpush.msra.mxu0 0.0
    %519 = vmatpush.msra.mxu0 0.0
    %520 = vmatpush.msra.mxu0 0.0
    %521 = vmatpush.msra.mxu0 0.0
    %522 = vmatpush.msra.mxu0 0.0
    %523 = vmatpush.msra.mxu0 %v464
    %524 = vmatpush.msra.mxu0 %v448
    %525 = vmatpush.msra.mxu0 %v432
    %526 = vmatpush.msra.mxu0 %v416
    %527 = vmatpush.msra.mxu0 %v336
    %528 = vmatpush.msra.mxu0 %v400
    %529 = vmatpush.msra.mxu0 %v384
    %530 = vmatpush.msra.mxu0 %v368
    %531 = vmatpush.msra.mxu0 %v352
    %532 = vmatmul.f32.gmra.mxu0 %v474
    %v533 = vpop.f32.mrf.mxu0
    %v534 = vadd.f32 %v471, %v533
    %535 = vdwg.mxu0
    %536 = vmatpush.msra.mxu0 0.0
    %537 = vmatpush.msra.mxu0 0.0
    %538 = vmatpush.msra.mxu0 0.0
    %539 = vmatpush.msra.mxu0 0.0
    %540 = vmatpush.msra.mxu0 0.0
    %541 = vmatpush.msra.mxu0 0.0
    %542 = vmatpush.msra.mxu0 0.0
    %543 = vmatpush.msra.mxu0 %v465
    %544 = vmatpush.msra.mxu0 %v449
    %545 = vmatpush.msra.mxu0 %v433
    %546 = vmatpush.msra.mxu0 %v417
    %547 = vmatpush.msra.mxu0 %v337
    %548 = vmatpush.msra.mxu0 %v401
    %549 = vmatpush.msra.mxu0 %v385
    %550 = vmatpush.msra.mxu0 %v369
    %551 = vmatpush.msra.mxu0 %v353
    %552 = vmatmul.f32.gmra.mxu0 %v474
    %v553 = vpop.f32.mrf.mxu0
    %v554 = vadd.f32 %v471, %v553
    %555 = vdwg.mxu0
    %v556 = vadd.f32 %v494, %v65
    %v557 = vadd.f32 %v514, %v66
    %v558 = vadd.f32 %v534, %v67
    %v559 = vadd.f32 %v554, %v68
    %560 = vst [vmem:[#allocation7] sm:$0xff] %v556
    %561 = vst [vmem:[#allocation7 + $0x8] sm:$0xff] %v557
    %562 = vst [vmem:[#allocation7 + $0x10] sm:$0xff] %v558
    %563 = vst [vmem:[#allocation7 + $0x18] sm:$0xff] %v559
    // Predicated region
    $region38: #{tpu_custom_call.1} parent=1 // pred_check
      _
    $region39: #{tpu_custom_call.1} parent=1 // pred_check_branch
      %565 = sbr.rel (0) target = $region41
    $region40: #{tpu_custom_call.1} parent=1 // pred_region
      %567 = vsyncadd [#allocation4], 0
      %s569 = sshll.u32 [#allocation7], 4
      %s570 = int_to_ptr.vmem [resolvable:$true] %s569
      %s571 = sshll.u32 %s7, 4
      %s572 = int_to_ptr.hbm [resolvable:$true] %s571
      %574 = dma.vmem_to_hbm [thread:$0]  %s570, 512, %s572, [#allocation4]
    $region41: #{tpu_custom_call.1} parent=1 // pred_fallthru
      _
    // Predicated region
    $region42: #{tpu_custom_call.1} parent=1 // pred_check
      _
    $region43: #{tpu_custom_call.1} parent=1 // pred_check_branch
      %576 = sbr.rel (0) target = $region45
    $region44: #{tpu_custom_call.1} parent=1 // pred_region
      %578 = dma.done [#allocation4], 512
    $region45: #{tpu_custom_call.1} parent=1 // pred_fallthru
      _
    %579 = vsyncpa [#allocation3], 1
    %580 = vsyncpa [#allocation6], 1
    %581 = vsyncpa [#allocation4], 1

</llo_original>
